<compile_context>
chip_gen: v6e
topology: v6e:2x2x1
jax: 0.10.0
libtpu: 0.0.40
codegen_flags: <defaults>
</compile_context>

<pallas_src>
import functools
import math

import jax
import jax.numpy as jnp
from jax.experimental import pallas as pl
from jax.experimental.pallas import tpu as pltpu


# ----------------------------------------------------------------------------- kernels


def _pe_kernel_flat(x_ref, mask_ref, pe_ref, o_ref, *, B: int, D: int):
    """Fast path (D % 128 == 0): one (TS, B*D) lane-dense tile.

    x_ref/o_ref: (TS, B*D)   mask_ref: (TS, B)   pe_ref: (TS, D)
    Static unroll over the (small) batch dim; because D is a multiple of 128,
    every per-batch slice is lane-aligned -> unmasked full-vreg loads/stores.
    """
    pe = pe_ref[...].astype(jnp.float32)                      # (TS, D), reused for all b
    for b in range(B):
        sl = slice(b * D, (b + 1) * D)
        xb = x_ref[:, sl].astype(jnp.float32)                 # (TS, D)
        mb = mask_ref[:, b : b + 1].astype(jnp.float32)       # (TS, 1) -> lane broadcast
        o_ref[:, sl] = (xb + mb * pe).astype(o_ref.dtype)


def _pe_kernel_3d(x_ref, mask_ref, pe_ref, o_ref):
    """Fallback path (D % 128 != 0): (TS, B, D) tiles with full-extent (B, D).

    x_ref/o_ref: (TS, B, D)   mask_ref: (TS, B, 1)   pe_ref: (TS, 1, D)
    Blocks are full-extent in their last two dims, so the layout stays legal and
    no per-batch slice straddles a vreg lane tile. Broadcasts are plain
    lane / sublane broadcasts inside the VPU.
    """
    x = x_ref[...].astype(jnp.float32)                        # (TS, B, D)
    m = mask_ref[...].astype(jnp.float32)                     # (TS, B, 1)
    pe = pe_ref[...].astype(jnp.float32)                      # (TS, 1, D)
    o_ref[...] = (x + m * pe).astype(o_ref.dtype)


# ----------------------------------------------------------------------------- tiling


def _choose_tile_s(S: int, x_row_bytes: int, side_row_bytes: int, align: int,
                   target_block_bytes: int = 4 * 1024 * 1024,
                   vmem_budget_bytes: int = 40 * 1024 * 1024) -> int:
    """Rows per S-tile.

    ~4 MiB x-tiles (mem-bound sweet spot); rows are a multiple of `align`
    (8 for f32 I/O, 16 for bf16 so packed sublane rows stay unmasked); for
    larger inputs cap ts <= S/2 so the grid has >= 2 steps (lets the
    'parallel' axis shard across v7x's two TensorCores); shrink if the
    double-buffered footprint (x + out + pe + lane-padded mask) exceeds the
    VMEM budget.
    """
    rows = max(align, target_block_bytes // max(x_row_bytes, 1))
    if S >= 2 * align:
        rows = min(rows, max(align, S // 2))
    rows = max(align, (rows // align) * align)

    def footprint(r: int) -> int:
        # double-buffered: 2*(x tile) + 2*(out tile) + 2*(pe tile + padded mask tile)
        return 2 * (2 * r * x_row_bytes + r * side_row_bytes)

    while rows > align and footprint(rows) > vmem_budget_bytes:
        rows = max(align, ((rows // 2) // align) * align)

    if rows >= S:
        return int(S)          # whole-extent block (always layout-legal)
    return int(rows)


# ----------------------------------------------------------------------------- wrapper


def make_pe_table(max_len: int, d_model: int) -> jnp.ndarray:
    """Sinusoidal positional-encoding table, shape (max_len, d_model). Matches the PyTorch buffer."""
    position = jnp.arange(max_len, dtype=jnp.float32)[:, None]                    # (L, 1)
    div_term = jnp.exp(
        jnp.arange(0, d_model, 2, dtype=jnp.float32) * (-math.log(10000.0) / d_model)
    )                                                                              # (ceil(D/2),)
    angles = position * div_term                                                   # (L, ceil(D/2))
    pe = jnp.zeros((max_len, d_model), dtype=jnp.float32)
    pe = pe.at[:, 0::2].set(jnp.sin(angles))
    pe = pe.at[:, 1::2].set(jnp.cos(angles[:, : d_model // 2]))                    # odd slots
    return pe


def positional_encoding_forward(x: jnp.ndarray, mask: jnp.ndarray, pe: jnp.ndarray,
                                *, tile_rows: int | None = None) -> jnp.ndarray:
    """
    x:    (S, B, D) float32 or bfloat16
    mask: (B, S)    float
    pe:   (max_len, D) float32 (max_len >= S); callers may pre-slice to (S, D)
    returns (S, B, D), same dtype as x
    """
    S, B, D = x.shape
    BD = B * D
    out_dtype = x.dtype
    x_itemsize = jnp.dtype(out_dtype).itemsize

    # Side streams follow the I/O dtype when x is sub-32-bit: on the bf16 path this
    # halves the pe/mask HBM bytes; f32 math inside the kernel either way.
    side_dtype = out_dtype if x_itemsize < 4 else jnp.float32
    side_itemsize = jnp.dtype(side_dtype).itemsize

    # Layout glue only (free row-major reshape / tiny transpose); the broadcast
    # multiply-add stays inside the kernel. pe_slice / mask_t could be hoisted and
    # reused across layers by the caller.
    mask_t = jnp.transpose(mask, (1, 0)).astype(side_dtype)      # (S, B)
    pe_slice = pe[:S, :].astype(side_dtype)                      # (S, D)

    align = 16 if x_itemsize < 4 else 8
    mask_lanes = ((B + 127) // 128) * 128                        # VMEM pads mask lanes to 128
    side_row_bytes = D * side_itemsize + mask_lanes * side_itemsize
    ts = tile_rows if tile_rows is not None else _choose_tile_s(
        S, BD * x_itemsize, side_row_bytes, align)
    grid = (pl.cdiv(S, ts),)

    cost = pl.CostEstimate(
        flops=2 * S * B * D,
        transcendentals=0,
        bytes_accessed=2 * S * BD * x_itemsize + S * B * side_itemsize + S * D * side_itemsize,
    )
    cparams = pltpu.CompilerParams(
        dimension_semantics=("parallel",),
        vmem_limit_bytes=48 * 1024 * 1024,
    )

    if D % 128 == 0:
        # Fast path: lane-dense flat layout, per-batch slices are lane-aligned.
        x_flat = x.reshape(S, BD)
        out_flat = pl.pallas_call(
            functools.partial(_pe_kernel_flat, B=B, D=D),
            out_shape=jax.ShapeDtypeStruct((S, BD), out_dtype),
            grid=grid,
            in_specs=[
                pl.BlockSpec((ts, BD), lambda i: (i, 0)),
                pl.BlockSpec((ts, B), lambda i: (i, 0)),
                pl.BlockSpec((ts, D), lambda i: (i, 0)),
            ],
            out_specs=pl.BlockSpec((ts, BD), lambda i: (i, 0)),
            compiler_params=cparams,
            input_output_aliases={0: 0},     # out may reuse x's buffer (x += addend)
            cost_estimate=cost,
        )(x_flat, mask_t, pe_slice)
        return out_flat.reshape(S, B, D)

    # Fallback: D not a multiple of 128 -> keep (B, D) at full extent inside the block
    # so every load/store stays lane-legal (no straddling per-batch slices).
    mask_3d = mask_t.reshape(S, B, 1)
    pe_3d = pe_slice.reshape(S, 1, D)
    out = pl.pallas_call(
        _pe_kernel_3d,
        out_shape=jax.ShapeDtypeStruct((S, B, D), out_dtype),
        grid=grid,
        in_specs=[
            pl.BlockSpec((ts, B, D), lambda i: (i, 0, 0)),
            pl.BlockSpec((ts, B, 1), lambda i: (i, 0, 0)),
            pl.BlockSpec((ts, 1, D), lambda i: (i, 0, 0)),
        ],
        out_specs=pl.BlockSpec((ts, B, D), lambda i: (i, 0, 0)),
        compiler_params=cparams,
        input_output_aliases={0: 0},
        cost_estimate=cost,
    )(x, mask_3d, pe_3d)
    return out


# ----------------------------------------------------------------------------- reference / test


def reference_forward(x, mask, pe):
    S = x.shape[0]
    pos = pe[:S, :][:, None, :].astype(jnp.float32)                       # (S, 1, D)
    m = jnp.transpose(mask, (1, 0))[:, :, None].astype(jnp.float32)       # (S, B, 1)
    return (x.astype(jnp.float32) + m * pos).astype(x.dtype)


if __name__ == "__main__":
    # Small shape consistent with the module: seq=8, batch=2, d_model=32 (exercises the
    # D % 128 != 0 fallback path).
    S, B, D = 8, 2, 32
    max_len = 64

    key = jax.random.PRNGKey(0)
    kx, km = jax.random.split(key)
    x = jax.random.normal(kx, (S, B, D), dtype=jnp.float32)
    mask = (jax.random.uniform(km, (B, S)) > 0.3).astype(jnp.float32)   # 0/1 padding mask
    pe = make_pe_table(max_len, D)

    ref = reference_forward(x, mask, pe)
    out = jax.block_until_ready(positional_encoding_forward(x, mask, pe))
    assert out.shape == (S, B, D)
    assert jnp.allclose(out, ref, atol=1e-6, rtol=1e-6), "f32 (D%128!=0 path) mismatch vs reference"

    # bf16 I/O path (bf16 side streams, f32 math inside the kernel, cast on store).
    x_bf = x.astype(jnp.bfloat16)
    out_bf = jax.block_until_ready(positional_encoding_forward(x_bf, mask, pe))
    ref_bf = reference_forward(x_bf, mask, pe)
    assert out_bf.dtype == jnp.bfloat16
    assert jnp.allclose(out_bf.astype(jnp.float32), ref_bf.astype(jnp.float32),
                        atol=2e-2, rtol=2e-2), "bf16 mismatch vs reference"

    # Larger shape: D % 128 == 0 fast path, multi-tile pipelined grid (grid >= 2 for megacore).
    S2, B2, D2 = 2048, 4, 256
    k2x, k2m = jax.random.split(jax.random.PRNGKey(1))
    x2 = jax.random.normal(k2x, (S2, B2, D2), dtype=jnp.float32)
    mask2 = (jax.random.uniform(k2m, (B2, S2)) > 0.3).astype(jnp.float32)
    pe2 = make_pe_table(S2, D2)
    out2 = jax.block_until_ready(positional_encoding_forward(x2, mask2, pe2))
    ref2 = reference_forward(x2, mask2, pe2)
    assert jnp.allclose(out2, ref2, atol=1e-5, rtol=1e-5), "multi-tile mismatch vs reference"

    # Partial last S-tile (S not divisible by ts) on the fast path, with aliasing.
    S3, B3, D3 = 200, 2, 256
    k3x, k3m = jax.random.split(jax.random.PRNGKey(2))
    x3 = jax.random.normal(k3x, (S3, B3, D3), dtype=jnp.float32)
    mask3 = (jax.random.uniform(k3m, (B3, S3)) > 0.3).astype(jnp.float32)
    pe3 = make_pe_table(S3, D3)
    out3 = jax.block_until_ready(positional_encoding_forward(x3, mask3, pe3, tile_rows=64))
    ref3 = reference_forward(x3, mask3, pe3)
    assert jnp.allclose(out3, ref3, atol=1e-5, rtol=1e-5), "partial-tile mismatch vs reference"

    print("KERNEL_OK")
</pallas_src>

<mosaic_0001>
module attributes {stable_mosaic.version = 11 : i64} {
  func.func @_pe_kernel_3d(%arg0: i32, %arg1: memref<8x2x32xf32, #tpu.memory_space<vmem>>, %arg2: memref<8x2x1xf32, #tpu.memory_space<vmem>>, %arg3: memref<8x1x32xf32, #tpu.memory_space<vmem>>, %arg4: memref<8x2x32xf32, #tpu.memory_space<vmem>>) attributes {dimension_semantics = [#tpu.dimension_semantics<parallel>], iteration_bounds = array<i64: 1>, scalar_prefetch = 0 : i64, scratch_operands = 0 : i64, tpu.core_type = #tpu.core_type<tc>, window_params = [{transform_indices = @transform_0, window_bounds = array<i64: 8, 2, 32>}, {transform_indices = @transform_1, window_bounds = array<i64: 8, 2, 1>}, {transform_indices = @transform_2, window_bounds = array<i64: 8, 1, 32>}, {transform_indices = @transform_3, window_bounds = array<i64: 8, 2, 32>}]} {
    %c0 = arith.constant 0 : index
    %c0_0 = arith.constant 0 : index
    %c0_1 = arith.constant 0 : index
    %0 = vector.load %arg1[%c0, %c0_0, %c0_1] : memref<8x2x32xf32, #tpu.memory_space<vmem>>, vector<8x2x32xf32>
    %c0_2 = arith.constant 0 : index
    %c0_3 = arith.constant 0 : index
    %c0_4 = arith.constant 0 : index
    %1 = vector.load %arg2[%c0_2, %c0_3, %c0_4] : memref<8x2x1xf32, #tpu.memory_space<vmem>>, vector<8x2x1xf32>
    %c0_5 = arith.constant 0 : index
    %c0_6 = arith.constant 0 : index
    %c0_7 = arith.constant 0 : index
    %2 = vector.load %arg3[%c0_5, %c0_6, %c0_7] : memref<8x1x32xf32, #tpu.memory_space<vmem>>, vector<8x1x32xf32>
    %3 = vector.broadcast %1 : vector<8x2x1xf32> to vector<8x2x32xf32>
    %4 = vector.broadcast %2 : vector<8x1x32xf32> to vector<8x2x32xf32>
    %5 = arith.mulf %3, %4 : vector<8x2x32xf32>
    %6 = arith.addf %0, %5 : vector<8x2x32xf32>
    %c0_8 = arith.constant 0 : index
    %c0_9 = arith.constant 0 : index
    %c0_10 = arith.constant 0 : index
    %7 = vector.load %arg4[%c0_8, %c0_9, %c0_10] : memref<8x2x32xf32, #tpu.memory_space<vmem>>, vector<8x2x32xf32>
    tpu.vector_store %arg4[%c0_8, %c0_9, %c0_10], %6 {strides = array<i32>} : memref<8x2x32xf32, #tpu.memory_space<vmem>>, vector<8x2x32xf32>,
    return
  }
  func.func @transform_0(%arg0: i32) -> (i32, i32, i32) {
    %c0_i32 = arith.constant 0 : i32
    %c0_i32_0 = arith.constant 0 : i32
    %c0_i32_1 = arith.constant 0 : i32
    return %arg0, %c0_i32, %c0_i32_0 : i32, i32, i32
  }
  func.func @transform_1(%arg0: i32) -> (i32, i32, i32) {
    %c0_i32 = arith.constant 0 : i32
    %c0_i32_0 = arith.constant 0 : i32
    %c0_i32_1 = arith.constant 0 : i32
    return %arg0, %c0_i32, %c0_i32_0 : i32, i32, i32
  }
  func.func @transform_2(%arg0: i32) -> (i32, i32, i32) {
    %c0_i32 = arith.constant 0 : i32
    %c0_i32_0 = arith.constant 0 : i32
    %c0_i32_1 = arith.constant 0 : i32
    return %arg0, %c0_i32, %c0_i32_0 : i32, i32, i32
  }
  func.func @transform_3(%arg0: i32) -> (i32, i32, i32) {
    %c0_i32 = arith.constant 0 : i32
    %c0_i32_0 = arith.constant 0 : i32
    %c0_i32_1 = arith.constant 0 : i32
    return %arg0, %c0_i32, %c0_i32_0 : i32, i32, i32
  }
}

</mosaic_0001>

<llo_original>
// kernel: tpu_custom_call.1
$region0: #{tpu_custom_call.1}
  #allocation0 [shape = 'u32[]', space=smem, size = 0x4, offset = 0x4, fixed_abs, tag = 'smem constant byte address 0x4 - core index']
  #allocation1 [shape = 'u32[144,128]{1,0:T(1,128)}', space=vmem, size = 0x12000, scoped, tag = 'internal scratch']
  %s0 = inlined_call_operand.hbm [shape: f32[8,2,32], index: 0, kind: input, shape index: {}, may-alias: {0,3}]
  %s1 = inlined_call_operand.vmem [shape: f32[8,2,1], index: 1, kind: input, shape index: {}]
  %s2 = inlined_call_operand.vmem [shape: f32[8,1,32], index: 2, kind: input, shape index: {}]
  %s3 = inlined_call_operand.hbm [shape: f32[8,2,32], index: 3, kind: output, shape index: {}, may-alias: {0,3}]
  %s4 = sld [smem:[#allocation0]]
  $region26: #{tpu_custom_call.1} parent=0
    _
  %s6 = ssub.s32 1, %s4
  %s7 = scalar_select 0, %s6, %s4
  $region1: #{tpu_custom_call.1} parent=0
    #allocation2 [shape = 'u8[8192]{0}', space=vmem, size = 0x2000, scoped, tag = 'input window, operand 0, single buffered']
    #allocation3 [shape = 's32[1]{0}', space=sflag, size = 0x4, scoped, tag = 'scoped memory for tpu_custom_call.1']
    #allocation4 [shape = 's32[1]{0}', space=sflag, size = 0x4, scoped, tag = 'scoped memory for tpu_custom_call.1']
    #allocation5 [shape = 'u8[8192]{0}', space=vmem, size = 0x2000, scoped, tag = 'output window, operand 0, single buffered']
    %8 = vsyncpa [#allocation3], 0
    %9 = vsyncpa [#allocation4], 0
    // Predicated region
    $region2: #{tpu_custom_call.1} parent=1 // pred_check
      _
    $region3: #{tpu_custom_call.1} parent=1 // pred_check_branch
      %11 = sbr.rel (0) target = $region5
    $region4: #{tpu_custom_call.1} parent=1 // pred_region
      %s13 = ssub.s32 256, 256
      %14 = vsyncadd [#allocation3], %s13
      %s15 = sshll.u32 [#allocation2], 4
      %s16 = int_to_ptr.vmem [resolvable:$true] %s15
      %21 = dma.hbm_to_vmem [thread:$0]  %s0, 256, %s16, [#allocation3], 32, 32, 2
    $region5: #{tpu_custom_call.1} parent=1 // pred_fallthru
      _
    // Predicated region
    $region6: #{tpu_custom_call.1} parent=1 // pred_check
      _
    $region7: #{tpu_custom_call.1} parent=1 // pred_check_branch
      %23 = sbr.rel (0) target = $region9
    $region8: #{tpu_custom_call.1} parent=1 // pred_region
      _
    $region9: #{tpu_custom_call.1} parent=1 // pred_fallthru
      _
    // Predicated region
    $region10: #{tpu_custom_call.1} parent=1 // pred_check
      _
    $region11: #{tpu_custom_call.1} parent=1 // pred_check_branch
      %25 = sbr.rel (0) target = $region13
    $region12: #{tpu_custom_call.1} parent=1 // pred_region
      _
    $region13: #{tpu_custom_call.1} parent=1 // pred_fallthru
      _
    // Predicated region
    $region14: #{tpu_custom_call.1} parent=1 // pred_check
      _
    $region15: #{tpu_custom_call.1} parent=1 // pred_check_branch
      %27 = sbr.rel (0) target = $region17
    $region16: #{tpu_custom_call.1} parent=1 // pred_region
      %28 = dma.done [#allocation3], 256
    $region17: #{tpu_custom_call.1} parent=1 // pred_fallthru
      _
    %v29 = vld [vmem:[#allocation2] sm:$0x3]
    %v30 = vld [vmem:[#allocation2 + $0x2] sm:$0x3]
    %v31 = vld [vmem:[#allocation2 + $0x4] sm:$0x3]
    %v32 = vld [vmem:[#allocation2 + $0x6] sm:$0x3]
    %v33 = vld [vmem:[#allocation2 + $0x8] sm:$0x3]
    %v34 = vld [vmem:[#allocation2 + $0xa] sm:$0x3]
    %v35 = vld [vmem:[#allocation2 + $0xc] sm:$0x3]
    %v36 = vld [vmem:[#allocation2 + $0xe] sm:$0x3]
    %v37 = vld [vmem:[%s1] sm:$0x3]
    %v38 = vld [vmem:[%s1 + $0x2] sm:$0x3]
    %v39 = vld [vmem:[%s1 + $0x4] sm:$0x3]
    %v40 = vld [vmem:[%s1 + $0x6] sm:$0x3]
    %v41 = vld [vmem:[%s1 + $0x8] sm:$0x3]
    %v42 = vld [vmem:[%s1 + $0xa] sm:$0x3]
    %v43 = vld [vmem:[%s1 + $0xc] sm:$0x3]
    %v44 = vld [vmem:[%s1 + $0xe] sm:$0x3]
    %v45 = vld [vmem:[%s2] sm:$0x1]
    %v46 = vld [vmem:[%s2 + $0x1] sm:$0x1]
    %v47 = vld [vmem:[%s2 + $0x2] sm:$0x1]
    %v48 = vld [vmem:[%s2 + $0x3] sm:$0x1]
    %v49 = vld [vmem:[%s2 + $0x4] sm:$0x1]
    %v50 = vld [vmem:[%s2 + $0x5] sm:$0x1]
    %v51 = vld [vmem:[%s2 + $0x6] sm:$0x1]
    %v52 = vld [vmem:[%s2 + $0x7] sm:$0x1]
    %54 = vset.pattern.permute.xlu0 0
    %55 = vperm.xlu0 %54, %v37
    %v56 = vpop.permute.xlu0 %55
    %59 = vset.pattern.permute.xlu0 0
    %60 = vperm.xlu0 %59, %v38
    %v61 = vpop.permute.xlu0 %60
    %64 = vset.pattern.permute.xlu0 0
    %65 = vperm.xlu0 %64, %v39
    %v66 = vpop.permute.xlu0 %65
    %69 = vset.pattern.permute.xlu0 0
    %70 = vperm.xlu0 %69, %v40
    %v71 = vpop.permute.xlu0 %70
    %74 = vset.pattern.permute.xlu0 0
    %75 = vperm.xlu0 %74, %v41
    %v76 = vpop.permute.xlu0 %75
    %79 = vset.pattern.permute.xlu0 0
    %80 = vperm.xlu0 %79, %v42
    %v81 = vpop.permute.xlu0 %80
    %84 = vset.pattern.permute.xlu0 0
    %85 = vperm.xlu0 %84, %v43
    %v86 = vpop.permute.xlu0 %85
    %89 = vset.pattern.permute.xlu0 0
    %90 = vperm.xlu0 %89, %v44
    %v91 = vpop.permute.xlu0 %90
    %v101 = vlaneseq
    %v102 = vshrl.u32 %v101, 7
    %v103 = vsub.s32 0, %v102
    %v104 = vrot.slane %v45, %v103
    %v105 = vlaneseq
    %v106 = vshrl.u32 %v105, 7
    %v107 = vsub.s32 0, %v106
    %v108 = vrot.slane %v46, %v107
    %v109 = vlaneseq
    %v110 = vshrl.u32 %v109, 7
    %v111 = vsub.s32 0, %v110
    %v112 = vrot.slane %v47, %v111
    %v113 = vlaneseq
    %v114 = vshrl.u32 %v113, 7
    %v115 = vsub.s32 0, %v114
    %v116 = vrot.slane %v48, %v115
    %v117 = vlaneseq
    %v118 = vshrl.u32 %v117, 7
    %v119 = vsub.s32 0, %v118
    %v120 = vrot.slane %v49, %v119
    %v121 = vlaneseq
    %v122 = vshrl.u32 %v121, 7
    %v123 = vsub.s32 0, %v122
    %v124 = vrot.slane %v50, %v123
    %v125 = vlaneseq
    %v126 = vshrl.u32 %v125, 7
    %v127 = vsub.s32 0, %v126
    %v128 = vrot.slane %v51, %v127
    %v129 = vlaneseq
    %v130 = vshrl.u32 %v129, 7
    %v131 = vsub.s32 0, %v130
    %v132 = vrot.slane %v52, %v131
    %v141 = vmul.f32 %v56, %v104
    %v142 = vmul.f32 %v61, %v108
    %v143 = vmul.f32 %v66, %v112
    %v144 = vmul.f32 %v71, %v116
    %v145 = vmul.f32 %v76, %v120
    %v146 = vmul.f32 %v81, %v124
    %v147 = vmul.f32 %v86, %v128
    %v148 = vmul.f32 %v91, %v132
    %v149 = vadd.f32 %v29, %v141
    %v150 = vadd.f32 %v30, %v142
    %v151 = vadd.f32 %v31, %v143
    %v152 = vadd.f32 %v32, %v144
    %v153 = vadd.f32 %v33, %v145
    %v154 = vadd.f32 %v34, %v146
    %v155 = vadd.f32 %v35, %v147
    %v156 = vadd.f32 %v36, %v148
    %vm157 = vcmask 254976
    %158 = vst.msk [vmem:[#allocation5] sm:$0x3] %vm157, %v149
    %159 = vst.msk [vmem:[#allocation5 + $0x2] sm:$0x3] %vm157, %v150
    %160 = vst.msk [vmem:[#allocation5 + $0x4] sm:$0x3] %vm157, %v151
    %161 = vst.msk [vmem:[#allocation5 + $0x6] sm:$0x3] %vm157, %v152
    %162 = vst.msk [vmem:[#allocation5 + $0x8] sm:$0x3] %vm157, %v153
    %163 = vst.msk [vmem:[#allocation5 + $0xa] sm:$0x3] %vm157, %v154
    %164 = vst.msk [vmem:[#allocation5 + $0xc] sm:$0x3] %vm157, %v155
    %165 = vst.msk [vmem:[#allocation5 + $0xe] sm:$0x3] %vm157, %v156
    // Predicated region
    $region18: #{tpu_custom_call.1} parent=1 // pred_check
      _
    $region19: #{tpu_custom_call.1} parent=1 // pred_check_branch
      %167 = sbr.rel (0) target = $region21
    $region20: #{tpu_custom_call.1} parent=1 // pred_region
      %s169 = ssub.s32 256, 256
      %170 = vsyncadd [#allocation4], %s169
      %s171 = sshll.u32 [#allocation5], 4
      %s172 = int_to_ptr.vmem [resolvable:$true] %s171
      %177 = dma.vmem_to_hbm [thread:$0]  %s172, 256, %s3, [#allocation4], 32, 32, 2
    $region21: #{tpu_custom_call.1} parent=1 // pred_fallthru
      _
    // Predicated region
    $region22: #{tpu_custom_call.1} parent=1 // pred_check
      _
    $region23: #{tpu_custom_call.1} parent=1 // pred_check_branch
      %179 = sbr.rel (0) target = $region25
    $region24: #{tpu_custom_call.1} parent=1 // pred_region
      %180 = dma.done [#allocation4], 256
    $region25: #{tpu_custom_call.1} parent=1 // pred_fallthru
      _
    %181 = vsyncpa [#allocation3], 1
    %182 = vsyncpa [#allocation4], 1

</llo_original>
